<compile_context>
chip_gen: v5e
topology: v5e:2x2
jax: 0.10.0
libtpu: 0.0.40
codegen_flags: <defaults>
</compile_context>

<pallas_src>
import functools

import jax
import jax.numpy as jnp
from jax.experimental import pallas as pl
from jax.experimental.pallas import tpu as pltpu

_SUBLANE = 8  # f32 sublane count; batch tile must be a multiple of this.


def _round_up(x, m):
    return ((x + m - 1) // m) * m


def _softplus(x):
    # Numerically stable softplus; equals x to f32 precision for large x,
    # matching torch.nn.Softplus(beta=1, threshold=20) behaviour.
    return jnp.maximum(x, 0.0) + jnp.log1p(jnp.exp(-jnp.abs(x)))


def _context_decoder_kernel(x_ref, w1_ref, b1_ref, w2_ref, b2_ref, o_ref):
    # One (tile, F) batch tile per grid step; both matmuls + activations fused.
    # Weights arrive already in the compute dtype; accumulate in f32 on the MXU.
    w1 = w1_ref[...]
    x = x_ref[...].astype(w1.dtype)
    h = jnp.dot(x, w1, preferred_element_type=jnp.float32) + b1_ref[...]
    h = _softplus(h)

    w2 = w2_ref[...]
    y = jnp.dot(h.astype(w2.dtype), w2,
                preferred_element_type=jnp.float32) + b2_ref[...]
    o_ref[...] = _softplus(y).astype(o_ref.dtype)


def _pick_batch_tile(batch, in_features, out_features, requested, itemsize):
    """Largest multiple-of-8 tile <= requested that fits comfortably in VMEM."""
    tile = _round_up(max(1, min(requested, batch)), _SUBLANE)
    # Double-buffered x + out tiles must stay well under the 32 MiB default
    # scoped VMEM (and leave headroom on v7x's 64 MiB physical VMEM).
    budget = 24 * 1024 * 1024
    per_row = 2 * (in_features + out_features) * itemsize
    max_rows = max(_SUBLANE, (budget // per_row) // _SUBLANE * _SUBLANE)
    return min(tile, max_rows)


@functools.partial(jax.jit, static_argnames=("batch_tile", "compute_dtype"))
def context_decoder(x, w1, b1, w2, b2, *, batch_tile=2048,
                    compute_dtype=jnp.bfloat16):
    """x: (B, F); w1: (F, N); w2: (N, N); b1, b2: (N,) or (1, N).  Returns (B, N)."""
    B, F = x.shape
    N = w1.shape[1]

    tile = _pick_batch_tile(B, F, N, batch_tile, jnp.dtype(x.dtype).itemsize)
    grid = (pl.cdiv(B, tile),)

    # Weights cast once on the host (they are tiny and VMEM-resident);
    # biases stay f32 so the post-matmul add / softplus run in f32.
    w1_c = w1.astype(compute_dtype)
    w2_c = w2.astype(compute_dtype)
    b1_r = jnp.asarray(b1, jnp.float32).reshape(1, N)
    b2_r = jnp.asarray(b2, jnp.float32).reshape(1, N)

    out = pl.pallas_call(
        _context_decoder_kernel,
        out_shape=jax.ShapeDtypeStruct((B, N), x.dtype),
        grid_spec=pltpu.PrefetchScalarGridSpec(
            num_scalar_prefetch=0,
            grid=grid,
            in_specs=[
                pl.BlockSpec((tile, F), lambda i: (i, 0)),   # x tile (true width F)
                pl.BlockSpec((F, N), lambda i: (0, 0)),      # W1 (VMEM-resident)
                pl.BlockSpec((1, N), lambda i: (0, 0)),      # b1 (resident)
                pl.BlockSpec((N, N), lambda i: (0, 0)),      # W2 (resident)
                pl.BlockSpec((1, N), lambda i: (0, 0)),      # b2 (resident)
            ],
            out_specs=pl.BlockSpec((tile, N), lambda i: (i, 0)),  # true width N
        ),
        compiler_params=pltpu.CompilerParams(
            dimension_semantics=("parallel",),
        ),
    )(x, w1_c, b1_r, w2_c, b2_r)

    return out


def init_params(key, hidden_units, covariate_size, horizon_size, context_size):
    """Deterministic init mimicking nn.Linear default (uniform +/- 1/sqrt(fan_in)).

    Weights are stored transposed relative to PyTorch, i.e. (in, out), so the
    kernel computes y = x @ W + b directly on the MXU.
    """
    in_features = hidden_units + covariate_size * horizon_size
    output_size = (horizon_size + 1) * context_size
    k1, k2, k3, k4 = jax.random.split(key, 4)

    bound1 = 1.0 / jnp.sqrt(in_features)
    w1 = jax.random.uniform(k1, (in_features, output_size), jnp.float32, -bound1, bound1)
    b1 = jax.random.uniform(k2, (1, output_size), jnp.float32, -bound1, bound1)

    bound2 = 1.0 / jnp.sqrt(output_size)
    w2 = jax.random.uniform(k3, (output_size, output_size), jnp.float32, -bound2, bound2)
    b2 = jax.random.uniform(k4, (1, output_size), jnp.float32, -bound2, bound2)
    return w1, b1, w2, b2


def _reference(x, w1, b1, w2, b2):
    h = _softplus(x @ w1 + b1)
    return _softplus(h @ w2 + b2)


if __name__ == "__main__":
    # Small shapes consistent with the module's forward:
    hidden_units = 32
    covariate_size = 4
    horizon_size = 8
    context_size = 6
    batch = 16

    in_features = hidden_units + covariate_size * horizon_size      # 64
    output_size = (horizon_size + 1) * context_size                 # 54

    key = jax.random.PRNGKey(0)
    kx, kp = jax.random.split(key)
    x = jax.random.normal(kx, (batch, in_features), jnp.float32)
    w1, b1, w2, b2 = init_params(kp, hidden_units, covariate_size,
                                 horizon_size, context_size)
    ref = _reference(x, w1, b1, w2, b2)

    # Default path: bf16 MXU operands, f32 bias/softplus/accumulation.
    out = jax.block_until_ready(context_decoder(x, w1, b1, w2, b2))
    assert out.shape == (batch, output_size)
    assert jnp.allclose(out, ref, atol=5e-2, rtol=5e-2)

    # f32 compute path: bit-accurate vs reference.
    out_f32 = jax.block_until_ready(
        context_decoder(x, w1, b1, w2, b2, compute_dtype=jnp.float32))
    assert out_f32.shape == (batch, output_size)
    assert jnp.allclose(out_f32, ref, atol=1e-5, rtol=1e-5)

    # Multi-step grid + non-divisible batch (partial boundary block, no host pad).
    x_odd = x[:13]
    out_odd = jax.block_until_ready(
        context_decoder(x_odd, w1, b1, w2, b2, batch_tile=8,
                        compute_dtype=jnp.float32))
    assert out_odd.shape == (13, output_size)
    assert jnp.allclose(out_odd, ref[:13], atol=1e-5, rtol=1e-5)

    print("KERNEL_OK")
</pallas_src>

<mosaic_0001>
module attributes {stable_mosaic.version = 11 : i64} {
  func.func @_context_decoder_kernel(%arg0: i32, %arg1: memref<16x64xf32, #tpu.memory_space<vmem>>, %arg2: memref<64x54xbf16, #tpu.memory_space<vmem>>, %arg3: memref<1x54xf32, #tpu.memory_space<vmem>>, %arg4: memref<54x54xbf16, #tpu.memory_space<vmem>>, %arg5: memref<1x54xf32, #tpu.memory_space<vmem>>, %arg6: memref<16x54xf32, #tpu.memory_space<vmem>>) attributes {dimension_semantics = [#tpu.dimension_semantics<parallel>], iteration_bounds = array<i64: 1>, scalar_prefetch = 0 : i64, scratch_operands = 0 : i64, tpu.core_type = #tpu.core_type<tc>, window_params = [{transform_indices = @transform_0, window_bounds = array<i64: 16, 64>}, {pipeline_mode = #tpu.pipeline_mode<synchronous>, transform_indices = @transform_1, window_bounds = array<i64: 64, 54>}, {pipeline_mode = #tpu.pipeline_mode<synchronous>, transform_indices = @transform_2, window_bounds = array<i64: 1, 54>}, {pipeline_mode = #tpu.pipeline_mode<synchronous>, transform_indices = @transform_3, window_bounds = array<i64: 54, 54>}, {pipeline_mode = #tpu.pipeline_mode<synchronous>, transform_indices = @transform_4, window_bounds = array<i64: 1, 54>}, {transform_indices = @transform_5, window_bounds = array<i64: 16, 54>}]} {
    %c0 = arith.constant 0 : index
    %c0_0 = arith.constant 0 : index
    %0 = vector.load %arg2[%c0, %c0_0] : memref<64x54xbf16, #tpu.memory_space<vmem>>, vector<64x54xbf16>
    %c0_1 = arith.constant 0 : index
    %c0_2 = arith.constant 0 : index
    %1 = vector.load %arg1[%c0_1, %c0_2] : memref<16x64xf32, #tpu.memory_space<vmem>>, vector<16x64xf32>
    %2 = arith.truncf %1 : vector<16x64xf32> to vector<16x64xbf16>
    %cst = arith.constant dense<0.000000e+00> : vector<16x54xf32>
    %3 = tpu.matmul %2, %0, %cst {dimension_numbers = #tpu.dot_dimension_numbers<[1], [0], [0], [1], [0, 0, 1, 1], [], []>} : vector<16x64xbf16>, vector<64x54xbf16>, vector<16x54xf32> -> vector<16x54xf32>
    %c0_3 = arith.constant 0 : index
    %c0_4 = arith.constant 0 : index
    %4 = vector.load %arg3[%c0_3, %c0_4] : memref<1x54xf32, #tpu.memory_space<vmem>>, vector<1x54xf32>
    %5 = vector.broadcast %4 : vector<1x54xf32> to vector<16x54xf32>
    %6 = arith.addf %3, %5 : vector<16x54xf32>
    %cst_5 = arith.constant 0.000000e+00 : f32
    %7 = vector.broadcast %cst_5 : f32 to vector<16x54xf32>
    %8 = arith.maximumf %6, %7 : vector<16x54xf32>
    %9 = math.absf %6 : vector<16x54xf32>
    %cst_6 = arith.constant 0.000000e+00 : f32
    %10 = vector.broadcast %cst_6 : f32 to vector<16x54xf32>
    %11 = arith.subf %10, %9 : vector<16x54xf32>
    %12 = math.exp %11 : vector<16x54xf32>
    %13 = math.log1p %12 : vector<16x54xf32>
    %14 = arith.addf %8, %13 : vector<16x54xf32>
    %c0_7 = arith.constant 0 : index
    %c0_8 = arith.constant 0 : index
    %15 = vector.load %arg4[%c0_7, %c0_8] : memref<54x54xbf16, #tpu.memory_space<vmem>>, vector<54x54xbf16>
    %16 = arith.truncf %14 : vector<16x54xf32> to vector<16x54xbf16>
    %cst_9 = arith.constant dense<0.000000e+00> : vector<16x54xf32>
    %17 = tpu.matmul %16, %15, %cst_9 {dimension_numbers = #tpu.dot_dimension_numbers<[1], [0], [0], [1], [0, 0, 1, 1], [], []>} : vector<16x54xbf16>, vector<54x54xbf16>, vector<16x54xf32> -> vector<16x54xf32>
    %c0_10 = arith.constant 0 : index
    %c0_11 = arith.constant 0 : index
    %18 = vector.load %arg5[%c0_10, %c0_11] : memref<1x54xf32, #tpu.memory_space<vmem>>, vector<1x54xf32>
    %19 = vector.broadcast %18 : vector<1x54xf32> to vector<16x54xf32>
    %20 = arith.addf %17, %19 : vector<16x54xf32>
    %cst_12 = arith.constant 0.000000e+00 : f32
    %21 = vector.broadcast %cst_12 : f32 to vector<16x54xf32>
    %22 = arith.maximumf %20, %21 : vector<16x54xf32>
    %23 = math.absf %20 : vector<16x54xf32>
    %cst_13 = arith.constant 0.000000e+00 : f32
    %24 = vector.broadcast %cst_13 : f32 to vector<16x54xf32>
    %25 = arith.subf %24, %23 : vector<16x54xf32>
    %26 = math.exp %25 : vector<16x54xf32>
    %27 = math.log1p %26 : vector<16x54xf32>
    %28 = arith.addf %22, %27 : vector<16x54xf32>
    %c0_14 = arith.constant 0 : index
    %c0_15 = arith.constant 0 : index
    %29 = vector.load %arg6[%c0_14, %c0_15] : memref<16x54xf32, #tpu.memory_space<vmem>>, vector<16x54xf32>
    tpu.vector_store %arg6[%c0_14, %c0_15], %28 {strides = array<i32>} : memref<16x54xf32, #tpu.memory_space<vmem>>, vector<16x54xf32>,
    return
  }
  func.func @transform_0(%arg0: i32) -> (i32, i32) {
    %c0_i32 = arith.constant 0 : i32
    %c0_i32_0 = arith.constant 0 : i32
    return %arg0, %c0_i32 : i32, i32
  }
  func.func @transform_1(%arg0: i32) -> (i32, i32) {
    %c0_i32 = arith.constant 0 : i32
    %c0_i32_0 = arith.constant 0 : i32
    %c0_i32_1 = arith.constant 0 : i32
    return %c0_i32, %c0_i32_0 : i32, i32
  }
  func.func @transform_2(%arg0: i32) -> (i32, i32) {
    %c0_i32 = arith.constant 0 : i32
    %c0_i32_0 = arith.constant 0 : i32
    %c0_i32_1 = arith.constant 0 : i32
    return %c0_i32, %c0_i32_0 : i32, i32
  }
  func.func @transform_3(%arg0: i32) -> (i32, i32) {
    %c0_i32 = arith.constant 0 : i32
    %c0_i32_0 = arith.constant 0 : i32
    %c0_i32_1 = arith.constant 0 : i32
    return %c0_i32, %c0_i32_0 : i32, i32
  }
  func.func @transform_4(%arg0: i32) -> (i32, i32) {
    %c0_i32 = arith.constant 0 : i32
    %c0_i32_0 = arith.constant 0 : i32
    %c0_i32_1 = arith.constant 0 : i32
    return %c0_i32, %c0_i32_0 : i32, i32
  }
  func.func @transform_5(%arg0: i32) -> (i32, i32) {
    %c0_i32 = arith.constant 0 : i32
    %c0_i32_0 = arith.constant 0 : i32
    return %arg0, %c0_i32 : i32, i32
  }
}

</mosaic_0001>

<llo_original>
// kernel: context_decoder.1
$region0: #{context_decoder.1}
  #allocation0 [shape = 'u32[]', space=smem, size = 0x4, offset = 0x4, fixed_abs, tag = 'smem constant byte address 0x4 - core index']
  #allocation1 [shape = 'u32[72,128]{1,0:T(1,128)}', space=vmem, size = 0x9000, scoped, tag = 'internal scratch']
  %s0 = inlined_call_operand.vmem [shape: f32[16,64], index: 0, kind: input, shape index: {}]
  %s1 = inlined_call_operand.vmem [shape: bf16[64,54], index: 1, kind: input, shape index: {}]
  %s2 = inlined_call_operand.vmem [shape: f32[1,54], index: 2, kind: input, shape index: {}]
  %s3 = inlined_call_operand.vmem [shape: bf16[54,54], index: 3, kind: input, shape index: {}]
  %s4 = inlined_call_operand.vmem [shape: f32[1,54], index: 4, kind: input, shape index: {}]
  %s5 = inlined_call_operand.hbm [shape: f32[16,54], index: 5, kind: output, shape index: {}]
  %s6 = sld [smem:[#allocation0]]
  $region30: #{context_decoder.1} parent=0
    _
  %s8 = ssub.s32 1, %s6
  %s9 = scalar_select 0, %s8, %s6
  $region1: #{context_decoder.1} parent=0
    #allocation2 [shape = 'u8[8192]{0}', space=vmem, size = 0x2000, scoped, tag = 'output window, operand 0, single buffered']
    #allocation3 [shape = 's32[1]{0}', space=sflag, size = 0x4, scoped, tag = 'scoped memory for context_decoder.1']
    %10 = vsyncpa [#allocation3], 0
    // Predicated region
    $region2: #{context_decoder.1} parent=1 // pred_check
      _
    $region3: #{context_decoder.1} parent=1 // pred_check_branch
      %12 = sbr.rel (0) target = $region5
    $region4: #{context_decoder.1} parent=1 // pred_region
      _
    $region5: #{context_decoder.1} parent=1 // pred_fallthru
      _
    // Predicated region
    $region6: #{context_decoder.1} parent=1 // pred_check
      _
    $region7: #{context_decoder.1} parent=1 // pred_check_branch
      %14 = sbr.rel (0) target = $region9
    $region8: #{context_decoder.1} parent=1 // pred_region
      _
    $region9: #{context_decoder.1} parent=1 // pred_fallthru
      _
    // Predicated region
    $region10: #{context_decoder.1} parent=1 // pred_check
      _
    $region11: #{context_decoder.1} parent=1 // pred_check_branch
      %16 = sbr.rel (0) target = $region13
    $region12: #{context_decoder.1} parent=1 // pred_region
      _
    $region13: #{context_decoder.1} parent=1 // pred_fallthru
      _
    // Predicated region
    $region14: #{context_decoder.1} parent=1 // pred_check
      _
    $region15: #{context_decoder.1} parent=1 // pred_check_branch
      %18 = sbr.rel (0) target = $region17
    $region16: #{context_decoder.1} parent=1 // pred_region
      _
    $region17: #{context_decoder.1} parent=1 // pred_fallthru
      _
    // Predicated region
    $region18: #{context_decoder.1} parent=1 // pred_check
      _
    $region19: #{context_decoder.1} parent=1 // pred_check_branch
      %20 = sbr.rel (0) target = $region21
    $region20: #{context_decoder.1} parent=1 // pred_region
      _
    $region21: #{context_decoder.1} parent=1 // pred_fallthru
      _
    %v22 = vld [vmem:[%s1] sm:$0xf]
    %v23 = vld [vmem:[%s1 + $0x4] sm:$0xf]
    %v24 = vld [vmem:[%s1 + $0x8] sm:$0xf]
    %v25 = vld [vmem:[%s1 + $0xc] sm:$0xf]
    %v26 = vld [vmem:[%s1 + $0x10] sm:$0xf]
    %v27 = vld [vmem:[%s1 + $0x14] sm:$0xf]
    %v28 = vld [vmem:[%s1 + $0x18] sm:$0xf]
    %v29 = vld [vmem:[%s1 + $0x1c] sm:$0xf]
    %v30 = vld [vmem:[%s0] sm:$0xff]
    %v31 = vld [vmem:[%s0 + $0x8] sm:$0xff]
    %v32 = vpack.c.bf16 %v31, %v30
    %v33 = vld [vmem:[%s2] sm:$0x1]
    %v35 = vperm.slane %v33, 0
    %v45 = vunpack.c.l.b16 %v22
    %v46 = vunpack.c.l.b16 %v23
    %v47 = vunpack.c.l.b16 %v24
    %v48 = vunpack.c.l.b16 %v25
    %v49 = vunpack.c.l.b16 %v26
    %v50 = vunpack.c.l.b16 %v27
    %v51 = vunpack.c.l.b16 %v28
    %v52 = vunpack.c.l.b16 %v29
    %v53 = vpack.c.b16 %v46, %v45
    %v54 = vpack.c.b16 %v48, %v47
    %v55 = vpack.c.b16 %v50, %v49
    %v56 = vpack.c.b16 %v52, %v51
    %vm61 = vcmask 523264
    %v63 = vsel %vm61, %v32, 0
    %65 = vmatpush.bf16.msra.mxu0 0
    %66 = vmatpush.bf16.msra.mxu0 0
    %67 = vmatpush.bf16.msra.mxu0 0
    %68 = vmatpush.bf16.msra.mxu0 0
    %69 = vmatpush.bf16.msra.mxu0 %v56
    %70 = vmatpush.bf16.msra.mxu0 %v55
    %71 = vmatpush.bf16.msra.mxu0 %v54
    %72 = vmatpush.bf16.msra.mxu0 %v53
    %73 = vmatmul.bf16.gmra.mxu0 %v63
    %v74 = vpop.f32.mrf.mxu0
    %v75 = vadd.f32 %v35, %v74
    %v76 = vpop.f32.mrf.mxu0
    %v77 = vadd.f32 %v35, %v76
    %78 = vdwg.mxu0
    %v79 = vmax.f32 %v75, 0.0
    %v80 = vmax.f32 %v77, 0.0
    %v81 = vand.u32 2147483647, %v75
    %v82 = vand.u32 2147483647, %v77
    %v83 = vsub.f32 0.0, %v81
    %v84 = vsub.f32 0.0, %v82
    %v85 = vmul.f32 %v83, 1.442695
    %v86 = vpow.pop %v85
    %v87 = vmul.f32 %v84, 1.442695
    %v88 = vpow.pop %v87
    %v89 = vadd.f32 %v86, 1.0
    %v90 = vlog2.pop %v89
    %v91 = vmul.f32 %v90, 0.6931472
    %v92 = vmul.f32 -0.5, %v86
    %v93 = vadd.f32 %v92, 1.0
    %v94 = vmul.f32 %v93, %v86
    %v95 = vand.u32 2147483647, %v86
    %vm96 = vcmp.lt.f32.partialorder %v95, 0.0004427343
    %v97 = vsel %vm96, %v94, %v91
    %v98 = vadd.f32 %v88, 1.0
    %v99 = vlog2.pop %v98
    %v100 = vmul.f32 %v99, 0.6931472
    %v101 = vmul.f32 -0.5, %v88
    %v102 = vadd.f32 %v101, 1.0
    %v103 = vmul.f32 %v102, %v88
    %v104 = vand.u32 2147483647, %v88
    %vm105 = vcmp.lt.f32.partialorder %v104, 0.0004427343
    %v106 = vsel %vm105, %v103, %v100
    %v107 = vadd.f32 %v79, %v97
    %v108 = vadd.f32 %v80, %v106
    %v109 = vld [vmem:[%s3] sm:$0xf]
    %v110 = vld [vmem:[%s3 + $0x4] sm:$0xf]
    %v111 = vld [vmem:[%s3 + $0x8] sm:$0xf]
    %v112 = vld [vmem:[%s3 + $0xc] sm:$0xf]
    %v113 = vld [vmem:[%s3 + $0x10] sm:$0xf]
    %v114 = vld [vmem:[%s3 + $0x14] sm:$0xf]
    %v115 = vld [vmem:[%s3 + $0x18] sm:$0x7]
    %v116 = vpack.c.bf16 %v108, %v107
    %v117 = vld [vmem:[%s4] sm:$0x1]
    %v119 = vperm.slane %v117, 0
    %v128 = vunpack.c.l.b16 %v109
    %v129 = vunpack.c.l.b16 %v110
    %v130 = vunpack.c.l.b16 %v111
    %v131 = vunpack.c.l.b16 %v112
    %v132 = vunpack.c.l.b16 %v113
    %v133 = vunpack.c.l.b16 %v114
    %v134 = vunpack.c.l.b16 %v115
    %v135 = vpack.c.b16 %v129, %v128
    %v136 = vpack.c.b16 %v131, %v130
    %v137 = vpack.c.b16 %v133, %v132
    %v138 = vpack.c.b16 %v134, %v134
    %vm142 = vcmask 441344
    %v144 = vsel %vm142, %v116, 0
    %vm146 = vcmask 1042432
    %v148 = vsel %vm146, %v138, 0
    %150 = vmatpush.bf16.msra.mxu0 0
    %151 = vmatpush.bf16.msra.mxu0 0
    %152 = vmatpush.bf16.msra.mxu0 0
    %153 = vmatpush.bf16.msra.mxu0 0
    %154 = vmatpush.bf16.msra.mxu0 %v148
    %155 = vmatpush.bf16.msra.mxu0 %v137
    %156 = vmatpush.bf16.msra.mxu0 %v136
    %157 = vmatpush.bf16.msra.mxu0 %v135
    %158 = vmatmul.bf16.gmra.mxu0 %v144
    %v159 = vpop.f32.mrf.mxu0
    %v160 = vadd.f32 %v119, %v159
    %v161 = vpop.f32.mrf.mxu0
    %v162 = vadd.f32 %v119, %v161
    %163 = vdwg.mxu0
    %v164 = vmax.f32 %v160, 0.0
    %v165 = vmax.f32 %v162, 0.0
    %v166 = vand.u32 2147483647, %v160
    %v167 = vand.u32 2147483647, %v162
    %v168 = vsub.f32 0.0, %v166
    %v169 = vsub.f32 0.0, %v167
    %v170 = vmul.f32 %v168, 1.442695
    %v171 = vpow.pop %v170
    %v172 = vmul.f32 %v169, 1.442695
    %v173 = vpow.pop %v172
    %v174 = vadd.f32 %v171, 1.0
    %v175 = vlog2.pop %v174
    %v176 = vmul.f32 %v175, 0.6931472
    %v177 = vmul.f32 -0.5, %v171
    %v178 = vadd.f32 %v177, 1.0
    %v179 = vmul.f32 %v178, %v171
    %v180 = vand.u32 2147483647, %v171
    %vm181 = vcmp.lt.f32.partialorder %v180, 0.0004427343
    %v182 = vsel %vm181, %v179, %v176
    %v183 = vadd.f32 %v173, 1.0
    %v184 = vlog2.pop %v183
    %v185 = vmul.f32 %v184, 0.6931472
    %v186 = vmul.f32 -0.5, %v173
    %v187 = vadd.f32 %v186, 1.0
    %v188 = vmul.f32 %v187, %v173
    %v189 = vand.u32 2147483647, %v173
    %vm190 = vcmp.lt.f32.partialorder %v189, 0.0004427343
    %v191 = vsel %vm190, %v188, %v185
    %v192 = vadd.f32 %v164, %v182
    %v193 = vadd.f32 %v165, %v191
    %194 = vst.msk [vmem:[#allocation2] sm:$0xff] %vm142, %v192
    %195 = vst.msk [vmem:[#allocation2 + $0x8] sm:$0xff] %vm142, %v193
    // Predicated region
    $region22: #{context_decoder.1} parent=1 // pred_check
      _
    $region23: #{context_decoder.1} parent=1 // pred_check_branch
      %197 = sbr.rel (0) target = $region25
    $region24: #{context_decoder.1} parent=1 // pred_region
      %199 = vsyncadd [#allocation3], 0
      %s200 = sshll.u32 [#allocation2], 4
      %s201 = int_to_ptr.vmem [resolvable:$true] %s200
      %s202 = sshll.u32 %s5, 4
      %s203 = int_to_ptr.hbm [resolvable:$true] %s202
      %208 = dma.vmem_to_hbm [thread:$0]  %s201, 256, %s203, [#allocation3], 128, 128, 8
    $region25: #{context_decoder.1} parent=1 // pred_fallthru
      _
    // Predicated region
    $region26: #{context_decoder.1} parent=1 // pred_check
      _
    $region27: #{context_decoder.1} parent=1 // pred_check_branch
      %210 = sbr.rel (0) target = $region29
    $region28: #{context_decoder.1} parent=1 // pred_region
      %212 = dma.done [#allocation3], 256
    $region29: #{context_decoder.1} parent=1 // pred_fallthru
      _
    %213 = vsyncpa [#allocation3], 1

</llo_original>
